<compile_context>
chip_gen: v7x
topology: tpu7x:2x2x1
jax: 0.10.0
libtpu: 0.0.40
codegen_flags: <defaults>
</compile_context>

<pallas_src>
import functools

import jax
import jax.numpy as jnp
import numpy as np
from jax.experimental import pallas as pl
from jax.experimental.pallas import tpu as pltpu


def _round_up(a: int, b: int) -> int:
    return (a + b - 1) // b * b


def _pick_tile(dim: int, max_tile: int, align: int) -> int:
    """Largest tile <= max_tile (multiple of `align`) that minimizes padding of `dim`."""
    max_tile = max(max_tile, align)
    dim_a = _round_up(dim, align)
    if dim_a <= max_tile:
        return dim_a
    lo = max(align, _round_up(max_tile // 4, align))   # avoid pathologically tiny tiles
    best_t, best_pad = align, None
    t = lo
    while t <= max_tile:
        pad = _round_up(dim_a, t)
        if best_pad is None or pad < best_pad or (pad == best_pad and t > best_t):
            best_t, best_pad = t, pad
        t += align
    return best_t


# --------------------------------------------------------------------------- kernels

def _noisy_linear_kernel(x_ref, wmu_ref, wsig_ref, eps_in_ref, eps_out_ref,
                         bias_ref, o_ref, acc_ref, *, combine_in_f32):
    """One (tm, tn) output tile, accumulated over the K grid axis (axis 2)."""
    k = pl.program_id(2)

    @pl.when(k == 0)
    def _init():
        acc_ref[...] = jnp.zeros_like(acc_ref)

    # Factorized noise rebuilt per tile (the dense (O, I) weight_epsilon never touches
    # HBM). Reassociated combine: w = mu + (sigma * eps_out_row) * eps_in_col — avoids
    # materializing the (tk, tn) eps outer-product temp.
    store_dt = wmu_ref.dtype
    comb_dt = jnp.float32 if combine_in_f32 else store_dt
    w = (wmu_ref[...].astype(comb_dt)
         + (wsig_ref[...].astype(comb_dt) * eps_out_ref[...].astype(comb_dt))
         * eps_in_ref[...].astype(comb_dt)).astype(store_dt)

    # Operands arrive in their HBM storage dtype (bf16 or f32); no per-step x recast.
    # TODO(synk): if bit-level f32 parity vs PyTorch matters at large K, verify Mosaic's
    # default f32 MXU precision (or request a higher-precision dot) and re-validate.
    acc_ref[...] += jnp.dot(x_ref[...], w, preferred_element_type=jnp.float32)

    @pl.when(k == pl.num_programs(2) - 1)
    def _finalize():
        o_ref[...] = (acc_ref[...] + bias_ref[...]).astype(o_ref.dtype)


def _plain_linear_kernel(x_ref, w_ref, bias_ref, o_ref, acc_ref):
    """Eval-mode path: y = x @ w_mu_t + bias_mu. sigma / epsilon never DMA'd."""
    k = pl.program_id(2)

    @pl.when(k == 0)
    def _init():
        acc_ref[...] = jnp.zeros_like(acc_ref)

    acc_ref[...] += jnp.dot(x_ref[...], w_ref[...], preferred_element_type=jnp.float32)

    @pl.when(k == pl.num_programs(2) - 1)
    def _finalize():
        o_ref[...] = (acc_ref[...] + bias_ref[...]).astype(o_ref.dtype)


# --------------------------------------------------------------------------- wrapper

def noisy_linear_forward(x, weight_mu_t, weight_sigma_t, eps_in, eps_out,
                         bias_mu, bias_sigma, *, training=True,
                         use_bf16_matmul=True, combine_noise_in_f32=None,
                         tile_m=512, tile_n=512, tile_k=None, weight_buffers=3):
    """Pallas implementation of NoisyLinear.forward.

    x:              (B, in_features)
    weight_*_t:     (in_features, out_features)  (stored transposed ONCE at init)
    eps_in:         (in_features,)   factorized noise (weight_epsilon = outer(eps_out, eps_in))
    eps_out:        (out_features,)  factorized noise (== bias_epsilon)
    bias_*:         (out_features,)
    returns:        (B, out_features) in x.dtype (f32 accumulation throughout)
    """
    B, in_f = x.shape
    in_f_w, out_f = weight_mu_t.shape
    assert in_f_w == in_f
    out_dtype = x.dtype

    store_dt = jnp.bfloat16 if use_bf16_matmul else jnp.float32
    itemsize = 2 if use_bf16_matmul else 4
    if tile_k is None:
        tile_k = 1024 if use_bf16_matmul else 512
    if combine_noise_in_f32 is None:
        # bf16 storage: combine natively in bf16 (v6e/v7x have bf16 VALUs).
        # TODO(synk): pass combine_noise_in_f32=True on v5e (no bf16 VALU) with bf16 storage.
        combine_noise_in_f32 = not use_bf16_matmul

    # Lane-dense, sublane-aligned, divisor-friendly tiles. tm covers the whole padded
    # batch whenever it fits so the weights are read from HBM only once.
    m_align = 16 if use_bf16_matmul else 8
    tm = _pick_tile(B, tile_m, m_align)
    tn = _pick_tile(out_f, tile_n, 128)
    tk = _pick_tile(in_f, tile_k, 128)

    B_pad = _round_up(B, tm)
    O_pad = _round_up(out_f, tn)
    I_pad = _round_up(in_f, tk)

    # Keep >= 2 parallel (i, j) tiles when possible so both v7x TensorCores get work.
    if (B_pad // tm) * (O_pad // tn) < 2:
        if tn % 256 == 0:
            tn //= 2
        elif tm % (2 * m_align) == 0:
            tm //= 2

    n_i, n_j, n_k = B_pad // tm, O_pad // tn, I_pad // tk
    grid = (n_i, n_j, n_k)

    def pad2(a, r, c):
        return jnp.pad(a, ((0, r - a.shape[0]), (0, c - a.shape[1])))

    # bf16 path: operands live in HBM as bf16 (halves the dominant weight traffic). In a
    # real training loop the parameters would simply be kept in bf16 persistently.
    x_p = pad2(x.astype(store_dt), B_pad, I_pad)
    wmu_p = pad2(weight_mu_t.astype(store_dt), I_pad, O_pad)

    # Bias combine is O(out): done in the wrapper, shipped as one f32 (1, O) vector.
    bias = bias_mu + bias_sigma * eps_out if training else bias_mu
    bias_p = pad2(bias.astype(jnp.float32).reshape(1, out_f), 1, O_pad)

    # --- VMEM budget, generation-aware cap --------------------------------------------
    n_wspecs = 2 if training else 1
    wbuf = max(2, weight_buffers)
    comb_bytes = 4 if combine_noise_in_f32 else itemsize
    est = (2 * tm * tk * itemsize                   # x tiles (double-buffered)
           + n_wspecs * wbuf * tk * tn * itemsize   # weight tiles (deep-buffered)
           + 2 * tm * tn * 4                        # output tiles
           + tm * tn * 4                            # f32 accumulator scratch
           + 2 * tk * tn * comb_bytes               # combined-weight temporaries
           + 4 * (tk + 2 * tn) * 4)                 # eps / bias vectors
    try:
        vmem_cap = pltpu.get_tpu_info().vmem_capacity_bytes
    except Exception:
        vmem_cap = 64 * 2 ** 20                     # conservative (v7x per-TC VMEM)
    cap = min(vmem_cap * 3 // 8, 48 * 2 ** 20)      # ~48 MiB v5e/v6e, ~24 MiB v7x
    vmem_limit = int(min(max(est + est // 2, 16 * 2 ** 20), cap))

    cparams = pltpu.CompilerParams(
        dimension_semantics=("parallel", "parallel", "arbitrary"),
        vmem_limit_bytes=vmem_limit)

    cost = pl.CostEstimate(
        flops=2 * B_pad * I_pad * O_pad,
        transcendentals=0,
        bytes_accessed=(n_j * B_pad * I_pad * itemsize                 # x, per N tile
                        + n_i * n_wspecs * I_pad * O_pad * itemsize    # weights, per M tile
                        + B_pad * O_pad * 4))                          # output

    # --- specs & call -------------------------------------------------------------------
    x_spec = pl.BlockSpec((tm, tk), lambda i, j, k: (i, k))
    bias_spec = pl.BlockSpec((1, tn), lambda i, j, k: (0, j))
    out_spec = pl.BlockSpec((tm, tn), lambda i, j, k: (i, j))
    out_shape = jax.ShapeDtypeStruct((B_pad, O_pad), out_dtype)
    scratch = [pltpu.VMEM((tm, tn), jnp.float32)]

    def make_w_spec(buffers):
        kw = {"pipeline_mode": pl.Buffered(buffers)} if buffers != 2 else {}
        return pl.BlockSpec((tk, tn), lambda i, j, k: (k, j), **kw)

    def build(buffers):
        w_spec = make_w_spec(buffers)
        if training:
            eps_in_spec = pl.BlockSpec((tk, 1), lambda i, j, k: (k, 0))
            eps_out_spec = pl.BlockSpec((1, tn), lambda i, j, k: (0, j))
            return pl.pallas_call(
                functools.partial(_noisy_linear_kernel,
                                  combine_in_f32=combine_noise_in_f32),
                out_shape=out_shape,
                grid_spec=pltpu.PrefetchScalarGridSpec(
                    num_scalar_prefetch=0, grid=grid,
                    in_specs=[x_spec, w_spec, w_spec, eps_in_spec, eps_out_spec,
                              bias_spec],
                    out_specs=out_spec, scratch_shapes=scratch),
                compiler_params=cparams, cost_estimate=cost)
        return pl.pallas_call(
            _plain_linear_kernel,
            out_shape=out_shape,
            grid_spec=pltpu.PrefetchScalarGridSpec(
                num_scalar_prefetch=0, grid=grid,
                in_specs=[x_spec, w_spec, bias_spec],
                out_specs=out_spec, scratch_shapes=scratch),
            compiler_params=cparams, cost_estimate=cost)

    if training:
        wsig_p = pad2(weight_sigma_t.astype(store_dt), I_pad, O_pad)
        eps_in_p = pad2(eps_in.astype(jnp.float32).reshape(in_f, 1), I_pad, 1)
        eps_out_p = pad2(eps_out.astype(jnp.float32).reshape(1, out_f), 1, O_pad)
        args = (x_p, wmu_p, wsig_p, eps_in_p, eps_out_p, bias_p)
    else:
        args = (x_p, wmu_p, bias_p)

    try:
        y_p = build(wbuf)(*args)
    except Exception:
        # Fallback if this jax version rejects pipeline_mode=pl.Buffered(n).
        y_p = build(2)(*args)

    return y_p[:B, :out_f]


# --------------------------------------------------------------------------- params / noise

def _scale_noise(key, size):
    """f(x) = sign(x) * sqrt(|x|) on standard normals (factorized noise)."""
    v = jax.random.normal(key, (size,), dtype=jnp.float32)
    return jnp.sign(v) * jnp.sqrt(jnp.abs(v))


def init_noisy_linear_params(key, in_features, out_features, std_init=0.4):
    """Re-implementation of reset_parameters(); weights stored transposed (in, out)."""
    k_wmu, k_bmu = jax.random.split(key, 2)
    mu_range = 1.0 / np.sqrt(in_features)
    weight_mu = jax.random.uniform(
        k_wmu, (out_features, in_features), jnp.float32, -mu_range, mu_range)
    weight_sigma = jnp.full((out_features, in_features),
                            std_init / np.sqrt(in_features), jnp.float32)
    bias_mu = jax.random.uniform(
        k_bmu, (out_features,), jnp.float32, -mu_range, mu_range)
    bias_sigma = jnp.full((out_features,),
                          std_init / np.sqrt(out_features), jnp.float32)
    # One-time transpose at init so the kernel consumes (in, out) directly as MXU RHS.
    return dict(weight_mu_t=weight_mu.T, weight_sigma_t=weight_sigma.T,
                bias_mu=bias_mu, bias_sigma=bias_sigma)


def reset_noise(key, in_features, out_features):
    """Re-implementation of reset_noise(): keep only the factorized vectors.

    weight_epsilon = outer(eps_out, eps_in) and bias_epsilon = eps_out are NEVER
    materialized; the kernel reconstructs the weight noise tile-by-tile.
    """
    # TODO(synk): torch's global RNG state is not reproduced; jax.random is used instead.
    k_in, k_out = jax.random.split(key)
    return _scale_noise(k_in, in_features), _scale_noise(k_out, out_features)


# --------------------------------------------------------------------------- demo / check

if __name__ == "__main__":
    key = jax.random.PRNGKey(0)
    k_params, k_noise, k_x = jax.random.split(key, 3)

    B, IN_F, OUT_F = 8, 32, 64
    params = init_noisy_linear_params(k_params, IN_F, OUT_F, std_init=0.4)
    eps_in, eps_out = reset_noise(k_noise, IN_F, OUT_F)
    x = jax.random.normal(k_x, (B, IN_F), dtype=jnp.float32)

    # numpy f32 reference (same math as the PyTorch module)
    w_t_ref = (np.asarray(params["weight_mu_t"])
               + np.asarray(params["weight_sigma_t"])
               * np.outer(np.asarray(eps_in), np.asarray(eps_out)))
    b_ref = np.asarray(params["bias_mu"]) + np.asarray(params["bias_sigma"]) * np.asarray(eps_out)
    y_ref = np.asarray(x) @ w_t_ref + b_ref

    # 1) exact f32-operand path (PyTorch-parity oriented)
    y_f32 = noisy_linear_forward(
        x, params["weight_mu_t"], params["weight_sigma_t"], eps_in, eps_out,
        params["bias_mu"], params["bias_sigma"], training=True, use_bf16_matmul=False)
    y_f32 = jax.block_until_ready(y_f32)
    np.testing.assert_allclose(np.asarray(y_f32), y_ref, rtol=1e-5, atol=1e-5)
    assert y_f32.shape == (B, OUT_F) and y_f32.dtype == jnp.float32

    # 2) default bf16-operand path (half the weight HBM bytes, native MXU rate)
    y_bf16 = noisy_linear_forward(
        x, params["weight_mu_t"], params["weight_sigma_t"], eps_in, eps_out,
        params["bias_mu"], params["bias_sigma"], training=True)
    y_bf16 = jax.block_until_ready(y_bf16)
    np.testing.assert_allclose(np.asarray(y_bf16), y_ref, rtol=2e-2, atol=2e-2)
    assert y_bf16.dtype == jnp.float32

    # 3) eval mode (sigma / epsilon never DMA'd)
    y_eval = noisy_linear_forward(
        x, params["weight_mu_t"], params["weight_sigma_t"], eps_in, eps_out,
        params["bias_mu"], params["bias_sigma"], training=False, use_bf16_matmul=False)
    y_eval = jax.block_until_ready(y_eval)
    y_eval_ref = np.asarray(x) @ np.asarray(params["weight_mu_t"]) + np.asarray(params["bias_mu"])
    np.testing.assert_allclose(np.asarray(y_eval), y_eval_ref, rtol=1e-5, atol=1e-5)

    # 4) multi-tile grid exercise (i=2, j=3, k=3 with forced small tiles), bf16 path
    B2, IN2, OUT2 = 32, 320, 384
    params2 = init_noisy_linear_params(jax.random.PRNGKey(1), IN2, OUT2)
    eps_in2, eps_out2 = reset_noise(jax.random.PRNGKey(2), IN2, OUT2)
    x2 = jax.random.normal(jax.random.PRNGKey(3), (B2, IN2), dtype=jnp.float32)
    y2 = noisy_linear_forward(
        x2, params2["weight_mu_t"], params2["weight_sigma_t"], eps_in2, eps_out2,
        params2["bias_mu"], params2["bias_sigma"], training=True,
        tile_m=16, tile_n=128, tile_k=128)
    y2 = jax.block_until_ready(y2)
    w2_ref = (np.asarray(params2["weight_mu_t"])
              + np.asarray(params2["weight_sigma_t"])
              * np.outer(np.asarray(eps_in2), np.asarray(eps_out2)))
    b2_ref = np.asarray(params2["bias_mu"]) + np.asarray(params2["bias_sigma"]) * np.asarray(eps_out2)
    y2_ref = np.asarray(x2) @ w2_ref + b2_ref
    np.testing.assert_allclose(np.asarray(y2), y2_ref, rtol=2e-2, atol=2e-2)
    assert y2.shape == (B2, OUT2) and y2.dtype == jnp.float32

    print("KERNEL_OK")
</pallas_src>

<mosaic_0001>
module attributes {stable_mosaic.version = 11 : i64} {
  func.func @_noisy_linear_kernel(%arg0: i32, %arg1: i32, %arg2: i32, %arg3: memref<8x128xf32, #tpu.memory_space<vmem>>, %arg4: memref<128x128xf32, #tpu.memory_space<vmem>>, %arg5: memref<128x128xf32, #tpu.memory_space<vmem>>, %arg6: memref<128x1xf32, #tpu.memory_space<vmem>>, %arg7: memref<1x128xf32, #tpu.memory_space<vmem>>, %arg8: memref<1x128xf32, #tpu.memory_space<vmem>>, %arg9: memref<8x128xf32, #tpu.memory_space<vmem>>, %arg10: memref<8x128xf32, #tpu.memory_space<vmem>>) attributes {dimension_semantics = [#tpu.dimension_semantics<parallel>, #tpu.dimension_semantics<parallel>, #tpu.dimension_semantics<arbitrary>], iteration_bounds = array<i64: 1, 1, 1>, scalar_prefetch = 0 : i64, scratch_operands = 1 : i64, tpu.core_type = #tpu.core_type<tc>, window_params = [{transform_indices = @transform_0, window_bounds = array<i64: 8, 128>}, {transform_indices = @transform_1, window_bounds = array<i64: 128, 128>}, {transform_indices = @transform_2, window_bounds = array<i64: 128, 128>}, {transform_indices = @transform_3, window_bounds = array<i64: 128, 1>}, {transform_indices = @transform_4, window_bounds = array<i64: 1, 128>}, {transform_indices = @transform_5, window_bounds = array<i64: 1, 128>}, {transform_indices = @transform_6, window_bounds = array<i64: 8, 128>}]} {
    %c0_i32 = arith.constant 0 : i32
    %0 = arith.cmpi eq, %arg2, %c0_i32 : i32
    %1 = arith.extui %0 : i1 to i32
    %c0_i32_0 = arith.constant 0 : i32
    %2 = arith.cmpi ne, %1, %c0_i32_0 : i32
    scf.if %2 {
      %cst_16 = arith.constant 0.000000e+00 : f32
      %20 = vector.broadcast %cst_16 : f32 to vector<8x128xf32>
      %c0_17 = arith.constant 0 : index
      %c0_18 = arith.constant 0 : index
      %21 = vector.load %arg10[%c0_17, %c0_18] : memref<8x128xf32, #tpu.memory_space<vmem>>, vector<8x128xf32>
      tpu.vector_store %arg10[%c0_17, %c0_18], %20 {strides = array<i32>} : memref<8x128xf32, #tpu.memory_space<vmem>>, vector<8x128xf32>,
    } else {
    }
    %c0 = arith.constant 0 : index
    %c0_1 = arith.constant 0 : index
    %3 = vector.load %arg4[%c0, %c0_1] : memref<128x128xf32, #tpu.memory_space<vmem>>, vector<128x128xf32>
    %c0_2 = arith.constant 0 : index
    %c0_3 = arith.constant 0 : index
    %4 = vector.load %arg5[%c0_2, %c0_3] : memref<128x128xf32, #tpu.memory_space<vmem>>, vector<128x128xf32>
    %c0_4 = arith.constant 0 : index
    %c0_5 = arith.constant 0 : index
    %5 = vector.load %arg7[%c0_4, %c0_5] : memref<1x128xf32, #tpu.memory_space<vmem>>, vector<1x128xf32>
    %6 = vector.broadcast %5 : vector<1x128xf32> to vector<128x128xf32>
    %7 = arith.mulf %4, %6 : vector<128x128xf32>
    %c0_6 = arith.constant 0 : index
    %c0_7 = arith.constant 0 : index
    %8 = vector.load %arg6[%c0_6, %c0_7] : memref<128x1xf32, #tpu.memory_space<vmem>>, vector<128x1xf32>
    %9 = vector.broadcast %8 : vector<128x1xf32> to vector<128x128xf32>
    %10 = arith.mulf %7, %9 : vector<128x128xf32>
    %11 = arith.addf %3, %10 : vector<128x128xf32>
    %c0_8 = arith.constant 0 : index
    %c0_9 = arith.constant 0 : index
    %12 = vector.load %arg10[%c0_8, %c0_9] : memref<8x128xf32, #tpu.memory_space<vmem>>, vector<8x128xf32>
    %c0_10 = arith.constant 0 : index
    %c0_11 = arith.constant 0 : index
    %13 = vector.load %arg3[%c0_10, %c0_11] : memref<8x128xf32, #tpu.memory_space<vmem>>, vector<8x128xf32>
    %cst = arith.constant dense<0.000000e+00> : vector<8x128xf32>
    %14 = tpu.matmul %13, %11, %cst {dimension_numbers = #tpu.dot_dimension_numbers<[1], [0], [0], [1], [0, 0, 1, 1], [], []>} : vector<8x128xf32>, vector<128x128xf32>, vector<8x128xf32> -> vector<8x128xf32>
    %15 = arith.addf %12, %14 : vector<8x128xf32>
    %c0_12 = arith.constant 0 : index
    %c0_13 = arith.constant 0 : index
    %16 = vector.load %arg10[%c0_12, %c0_13] : memref<8x128xf32, #tpu.memory_space<vmem>>, vector<8x128xf32>
    tpu.vector_store %arg10[%c0_12, %c0_13], %15 {strides = array<i32>} : memref<8x128xf32, #tpu.memory_space<vmem>>, vector<8x128xf32>,
    %c0_i32_14 = arith.constant 0 : i32
    %17 = arith.cmpi eq, %arg2, %c0_i32_14 : i32
    %18 = arith.extui %17 : i1 to i32
    %c0_i32_15 = arith.constant 0 : i32
    %19 = arith.cmpi ne, %18, %c0_i32_15 : i32
    scf.if %19 {
      %c0_16 = arith.constant 0 : index
      %c0_17 = arith.constant 0 : index
      %20 = vector.load %arg10[%c0_16, %c0_17] : memref<8x128xf32, #tpu.memory_space<vmem>>, vector<8x128xf32>
      %c0_18 = arith.constant 0 : index
      %c0_19 = arith.constant 0 : index
      %21 = vector.load %arg8[%c0_18, %c0_19] : memref<1x128xf32, #tpu.memory_space<vmem>>, vector<1x128xf32>
      %22 = vector.broadcast %21 : vector<1x128xf32> to vector<8x128xf32>
      %23 = arith.addf %20, %22 : vector<8x128xf32>
      %c0_20 = arith.constant 0 : index
      %c0_21 = arith.constant 0 : index
      %24 = vector.load %arg9[%c0_20, %c0_21] : memref<8x128xf32, #tpu.memory_space<vmem>>, vector<8x128xf32>
      tpu.vector_store %arg9[%c0_20, %c0_21], %23 {strides = array<i32>} : memref<8x128xf32, #tpu.memory_space<vmem>>, vector<8x128xf32>,
    } else {
    }
    return
  }
  func.func @transform_0(%arg0: i32, %arg1: i32, %arg2: i32) -> (i32, i32) {
    %c0_i32 = arith.constant 0 : i32
    return %arg0, %arg2 : i32, i32
  }
  func.func @transform_1(%arg0: i32, %arg1: i32, %arg2: i32) -> (i32, i32) {
    %c0_i32 = arith.constant 0 : i32
    return %arg2, %arg1 : i32, i32
  }
  func.func @transform_2(%arg0: i32, %arg1: i32, %arg2: i32) -> (i32, i32) {
    %c0_i32 = arith.constant 0 : i32
    return %arg2, %arg1 : i32, i32
  }
  func.func @transform_3(%arg0: i32, %arg1: i32, %arg2: i32) -> (i32, i32) {
    %c0_i32 = arith.constant 0 : i32
    %c0_i32_0 = arith.constant 0 : i32
    return %arg2, %c0_i32 : i32, i32
  }
  func.func @transform_4(%arg0: i32, %arg1: i32, %arg2: i32) -> (i32, i32) {
    %c0_i32 = arith.constant 0 : i32
    %c0_i32_0 = arith.constant 0 : i32
    return %c0_i32, %arg1 : i32, i32
  }
  func.func @transform_5(%arg0: i32, %arg1: i32, %arg2: i32) -> (i32, i32) {
    %c0_i32 = arith.constant 0 : i32
    %c0_i32_0 = arith.constant 0 : i32
    return %c0_i32, %arg1 : i32, i32
  }
  func.func @transform_6(%arg0: i32, %arg1: i32, %arg2: i32) -> (i32, i32) {
    %c0_i32 = arith.constant 0 : i32
    return %arg0, %arg1 : i32, i32
  }
}

</mosaic_0001>

<llo_original>
// kernel: tpu_custom_call.1
$region0: #{tpu_custom_call.1}
  #allocation0 [shape = 'u32[]', space=smem, size = 0x4, offset = 0x4, fixed_abs, tag = 'smem constant byte address 0x4 - core index']
  #allocation1 [shape = 'u32[144,128]{1,0:T(1,128)}', space=vmem, size = 0x12000, scoped, tag = 'internal scratch']
  #allocation2 [shape = 'f32[8,128]{1,0:T(8,128)}', space=vmem, size = 0x1000, scoped, tag = 'scratch operand']
  %s0 = inlined_call_operand.hbm [shape: f32[8,128], index: 0, kind: input, shape index: {}]
  %s1 = inlined_call_operand.vmem [shape: f32[128,128], index: 1, kind: input, shape index: {}]
  %s2 = inlined_call_operand.hbm [shape: f32[128,128], index: 2, kind: input, shape index: {}]
  %s3 = inlined_call_operand.vmem [shape: f32[128,1], index: 3, kind: input, shape index: {}]
  %s4 = inlined_call_operand.vmem [shape: f32[1,128], index: 4, kind: input, shape index: {}]
  %s5 = inlined_call_operand.vmem [shape: f32[1,128], index: 5, kind: input, shape index: {}]
  %s6 = inlined_call_operand.hbm [shape: f32[8,128], index: 6, kind: output, shape index: {}]
  %s7 = sld [smem:[#allocation0]]
  $region50: #{tpu_custom_call.1} parent=0
    _
  %s9 = ssub.s32 1, %s7
  %s10 = scalar_select 0, %s9, %s7
  $region1: #{tpu_custom_call.1} parent=0
    #allocation3 [shape = 'u8[4096]{0}', space=vmem, size = 0x1000, scoped, tag = 'input window, operand 0, single buffered']
    #allocation4 [shape = 's32[1]{0}', space=sflag, size = 0x4, scoped, tag = 'scoped memory for tpu_custom_call.1']
    #allocation5 [shape = 's32[1]{0}', space=sflag, size = 0x4, scoped, tag = 'scoped memory for tpu_custom_call.1']
    #allocation6 [shape = 'u8[65536]{0}', space=vmem, size = 0x10000, scoped, tag = 'input window, operand 2, single buffered']
    #allocation7 [shape = 's32[1]{0}', space=sflag, size = 0x4, scoped, tag = 'scoped memory for tpu_custom_call.1']
    #allocation8 [shape = 'u8[4096]{0}', space=vmem, size = 0x1000, scoped, tag = 'output window, operand 0, single buffered']
    %11 = vsyncpa [#allocation4], 0
    %12 = vsyncpa [#allocation7], 0
    %13 = vsyncpa [#allocation5], 0
    // Predicated region
    $region2: #{tpu_custom_call.1} parent=1 // pred_check
      _
    $region3: #{tpu_custom_call.1} parent=1 // pred_check_branch
      %15 = sbr.rel (0) target = $region5
    $region4: #{tpu_custom_call.1} parent=1 // pred_region
      %s17 = ssub.s32 128, 128
      %18 = vsyncadd [#allocation4], %s17
      %s20 = sshll.u32 [#allocation3], 4
      %s21 = int_to_ptr.vmem [resolvable:$true] %s20
      %23 = dma.hbm_to_vmem [thread:$0]  %s0, 128, %s21, [#allocation4]
    $region5: #{tpu_custom_call.1} parent=1 // pred_fallthru
      _
    // Predicated region
    $region6: #{tpu_custom_call.1} parent=1 // pred_check
      _
    $region7: #{tpu_custom_call.1} parent=1 // pred_check_branch
      %25 = sbr.rel (0) target = $region9
    $region8: #{tpu_custom_call.1} parent=1 // pred_region
      _
    $region9: #{tpu_custom_call.1} parent=1 // pred_fallthru
      _
    // Predicated region
    $region10: #{tpu_custom_call.1} parent=1 // pred_check
      _
    $region11: #{tpu_custom_call.1} parent=1 // pred_check_branch
      %27 = sbr.rel (0) target = $region13
    $region12: #{tpu_custom_call.1} parent=1 // pred_region
      %s29 = ssub.s32 2048, 2048
      %30 = vsyncadd [#allocation7], %s29
      %s31 = sshll.u32 [#allocation6], 4
      %s32 = int_to_ptr.vmem [resolvable:$true] %s31
      %37 = dma.hbm_to_vmem [thread:$0]  %s2, 2048, %s32, [#allocation7], 128, 128, 8
    $region13: #{tpu_custom_call.1} parent=1 // pred_fallthru
      _
    // Predicated region
    $region14: #{tpu_custom_call.1} parent=1 // pred_check
      _
    $region15: #{tpu_custom_call.1} parent=1 // pred_check_branch
      %39 = sbr.rel (0) target = $region17
    $region16: #{tpu_custom_call.1} parent=1 // pred_region
      _
    $region17: #{tpu_custom_call.1} parent=1 // pred_fallthru
      _
    // Predicated region
    $region18: #{tpu_custom_call.1} parent=1 // pred_check
      _
    $region19: #{tpu_custom_call.1} parent=1 // pred_check_branch
      %41 = sbr.rel (0) target = $region21
    $region20: #{tpu_custom_call.1} parent=1 // pred_region
      _
    $region21: #{tpu_custom_call.1} parent=1 // pred_fallthru
      _
    // Predicated region
    $region22: #{tpu_custom_call.1} parent=1 // pred_check
      _
    $region23: #{tpu_custom_call.1} parent=1 // pred_check_branch
      %43 = sbr.rel (0) target = $region25
    $region24: #{tpu_custom_call.1} parent=1 // pred_region
      _
    $region25: #{tpu_custom_call.1} parent=1 // pred_fallthru
      _
    // Predicated region
    $region26: #{tpu_custom_call.1} parent=1 // pred_check
      _
    $region27: #{tpu_custom_call.1} parent=1 // pred_check_branch
      %45 = sbr.rel (0) target = $region29
    $region28: #{tpu_custom_call.1} parent=1 // pred_region
      %46 = dma.done [#allocation4], 128
    $region29: #{tpu_custom_call.1} parent=1 // pred_fallthru
      _
    // Predicated region
    $region30: #{tpu_custom_call.1} parent=1 // pred_check
      _
    $region31: #{tpu_custom_call.1} parent=1 // pred_check_branch
      %48 = sbr.rel (0) target = $region33
    $region32: #{tpu_custom_call.1} parent=1 // pred_region
      %49 = dma.done [#allocation7], 2048
    $region33: #{tpu_custom_call.1} parent=1 // pred_fallthru
      _
    %p50 = scmp.eq.s32.totalorder 0, 0
    // Predicated region
    $region34: #{tpu_custom_call.1} parent=1 // pred_check
      %p51 = pneg %p50
    $region35: #{tpu_custom_call.1} parent=1 // pred_check_branch
      %53 = sbr.rel (%p51) target = $region37
    $region36: #{tpu_custom_call.1} parent=1 // pred_region
      %54 = vst [vmem:[#allocation2] sm:$0xff] 0.0
    $region37: #{tpu_custom_call.1} parent=1 // pred_fallthru
      _
    %v55 = vld [vmem:[%s1] sm:$0xff]
    %v56 = vld [vmem:[%s1 + $0x8] sm:$0xff]
    %v57 = vld [vmem:[%s1 + $0x10] sm:$0xff]
    %v58 = vld [vmem:[%s1 + $0x18] sm:$0xff]
    %v59 = vld [vmem:[%s1 + $0x20] sm:$0xff]
    %v60 = vld [vmem:[%s1 + $0x28] sm:$0xff]
    %v61 = vld [vmem:[%s1 + $0x30] sm:$0xff]
    %v62 = vld [vmem:[%s1 + $0x38] sm:$0xff]
    %v63 = vld [vmem:[%s1 + $0x40] sm:$0xff]
    %v64 = vld [vmem:[%s1 + $0x48] sm:$0xff]
    %v65 = vld [vmem:[%s1 + $0x50] sm:$0xff]
    %v66 = vld [vmem:[%s1 + $0x58] sm:$0xff]
    %v67 = vld [vmem:[%s1 + $0x60] sm:$0xff]
    %v68 = vld [vmem:[%s1 + $0x68] sm:$0xff]
    %v69 = vld [vmem:[%s1 + $0x70] sm:$0xff]
    %v70 = vld [vmem:[%s1 + $0x78] sm:$0xff]
    %v71 = vld [vmem:[#allocation6] sm:$0xff]
    %v72 = vld [vmem:[#allocation6 + $0x8] sm:$0xff]
    %v73 = vld [vmem:[#allocation6 + $0x10] sm:$0xff]
    %v74 = vld [vmem:[#allocation6 + $0x18] sm:$0xff]
    %v75 = vld [vmem:[#allocation6 + $0x20] sm:$0xff]
    %v76 = vld [vmem:[#allocation6 + $0x28] sm:$0xff]
    %v77 = vld [vmem:[#allocation6 + $0x30] sm:$0xff]
    %v78 = vld [vmem:[#allocation6 + $0x38] sm:$0xff]
    %v79 = vld [vmem:[#allocation6 + $0x40] sm:$0xff]
    %v80 = vld [vmem:[#allocation6 + $0x48] sm:$0xff]
    %v81 = vld [vmem:[#allocation6 + $0x50] sm:$0xff]
    %v82 = vld [vmem:[#allocation6 + $0x58] sm:$0xff]
    %v83 = vld [vmem:[#allocation6 + $0x60] sm:$0xff]
    %v84 = vld [vmem:[#allocation6 + $0x68] sm:$0xff]
    %v85 = vld [vmem:[#allocation6 + $0x70] sm:$0xff]
    %v86 = vld [vmem:[#allocation6 + $0x78] sm:$0xff]
    %v87 = vld [vmem:[%s4] sm:$0x1]
    %v89 = vlaneseq
    %v90 = vshrl.u32 %v89, 7
    %v91 = vsub.s32 0, %v90
    %v92 = vrot.slane %v87, %v91
    %v94 = vmul.f32 %v71, %v92
    %v95 = vmul.f32 %v72, %v92
    %v96 = vmul.f32 %v73, %v92
    %v97 = vmul.f32 %v74, %v92
    %v98 = vmul.f32 %v75, %v92
    %v99 = vmul.f32 %v76, %v92
    %v100 = vmul.f32 %v77, %v92
    %v101 = vmul.f32 %v78, %v92
    %v102 = vmul.f32 %v79, %v92
    %v103 = vmul.f32 %v80, %v92
    %v104 = vmul.f32 %v81, %v92
    %v105 = vmul.f32 %v82, %v92
    %v106 = vmul.f32 %v83, %v92
    %v107 = vmul.f32 %v84, %v92
    %v108 = vmul.f32 %v85, %v92
    %v109 = vmul.f32 %v86, %v92
    %v110 = vld [vmem:[%s3] sm:$0xff]
    %v111 = vld [vmem:[%s3 + $0x8] sm:$0xff]
    %v112 = vld [vmem:[%s3 + $0x10] sm:$0xff]
    %v113 = vld [vmem:[%s3 + $0x18] sm:$0xff]
    %v114 = vld [vmem:[%s3 + $0x20] sm:$0xff]
    %v115 = vld [vmem:[%s3 + $0x28] sm:$0xff]
    %v116 = vld [vmem:[%s3 + $0x30] sm:$0xff]
    %v117 = vld [vmem:[%s3 + $0x38] sm:$0xff]
    %v118 = vld [vmem:[%s3 + $0x40] sm:$0xff]
    %v119 = vld [vmem:[%s3 + $0x48] sm:$0xff]
    %v120 = vld [vmem:[%s3 + $0x50] sm:$0xff]
    %v121 = vld [vmem:[%s3 + $0x58] sm:$0xff]
    %v122 = vld [vmem:[%s3 + $0x60] sm:$0xff]
    %v123 = vld [vmem:[%s3 + $0x68] sm:$0xff]
    %v124 = vld [vmem:[%s3 + $0x70] sm:$0xff]
    %v125 = vld [vmem:[%s3 + $0x78] sm:$0xff]
    %127 = vset.pattern.permute.xlu0 0
    %128 = vperm.xlu0 %127, %v110
    %v129 = vpop.permute.xlu0 %128
    %132 = vset.pattern.permute.xlu0 0
    %133 = vperm.xlu0 %132, %v111
    %v134 = vpop.permute.xlu0 %133
    %137 = vset.pattern.permute.xlu0 0
    %138 = vperm.xlu0 %137, %v112
    %v139 = vpop.permute.xlu0 %138
    %142 = vset.pattern.permute.xlu0 0
    %143 = vperm.xlu0 %142, %v113
    %v144 = vpop.permute.xlu0 %143
    %147 = vset.pattern.permute.xlu0 0
    %148 = vperm.xlu0 %147, %v114
    %v149 = vpop.permute.xlu0 %148
    %152 = vset.pattern.permute.xlu0 0
    %153 = vperm.xlu0 %152, %v115
    %v154 = vpop.permute.xlu0 %153
    %157 = vset.pattern.permute.xlu0 0
    %158 = vperm.xlu0 %157, %v116
    %v159 = vpop.permute.xlu0 %158
    %162 = vset.pattern.permute.xlu0 0
    %163 = vperm.xlu0 %162, %v117
    %v164 = vpop.permute.xlu0 %163
    %167 = vset.pattern.permute.xlu0 0
    %168 = vperm.xlu0 %167, %v118
    %v169 = vpop.permute.xlu0 %168
    %172 = vset.pattern.permute.xlu0 0
    %173 = vperm.xlu0 %172, %v119
    %v174 = vpop.permute.xlu0 %173
    %177 = vset.pattern.permute.xlu0 0
    %178 = vperm.xlu0 %177, %v120
    %v179 = vpop.permute.xlu0 %178
    %182 = vset.pattern.permute.xlu0 0
    %183 = vperm.xlu0 %182, %v121
    %v184 = vpop.permute.xlu0 %183
    %187 = vset.pattern.permute.xlu0 0
    %188 = vperm.xlu0 %187, %v122
    %v189 = vpop.permute.xlu0 %188
    %192 = vset.pattern.permute.xlu0 0
    %193 = vperm.xlu0 %192, %v123
    %v194 = vpop.permute.xlu0 %193
    %197 = vset.pattern.permute.xlu0 0
    %198 = vperm.xlu0 %197, %v124
    %v199 = vpop.permute.xlu0 %198
    %202 = vset.pattern.permute.xlu0 0
    %203 = vperm.xlu0 %202, %v125
    %v204 = vpop.permute.xlu0 %203
    %v206 = vmul.f32 %v94, %v129
    %v207 = vmul.f32 %v95, %v134
    %v208 = vmul.f32 %v96, %v139
    %v209 = vmul.f32 %v97, %v144
    %v210 = vmul.f32 %v98, %v149
    %v211 = vmul.f32 %v99, %v154
    %v212 = vmul.f32 %v100, %v159
    %v213 = vmul.f32 %v101, %v164
    %v214 = vmul.f32 %v102, %v169
    %v215 = vmul.f32 %v103, %v174
    %v216 = vmul.f32 %v104, %v179
    %v217 = vmul.f32 %v105, %v184
    %v218 = vmul.f32 %v106, %v189
    %v219 = vmul.f32 %v107, %v194
    %v220 = vmul.f32 %v108, %v199
    %v221 = vmul.f32 %v109, %v204
    %v222 = vadd.f32 %v55, %v206
    %v223 = vadd.f32 %v56, %v207
    %v224 = vadd.f32 %v57, %v208
    %v225 = vadd.f32 %v58, %v209
    %v226 = vadd.f32 %v59, %v210
    %v227 = vadd.f32 %v60, %v211
    %v228 = vadd.f32 %v61, %v212
    %v229 = vadd.f32 %v62, %v213
    %v230 = vadd.f32 %v63, %v214
    %v231 = vadd.f32 %v64, %v215
    %v232 = vadd.f32 %v65, %v216
    %v233 = vadd.f32 %v66, %v217
    %v234 = vadd.f32 %v67, %v218
    %v235 = vadd.f32 %v68, %v219
    %v236 = vadd.f32 %v69, %v220
    %v237 = vadd.f32 %v70, %v221
    %v238 = vld [vmem:[#allocation2] sm:$0xff]
    %v239 = vld [vmem:[#allocation3] sm:$0xff]
    %240 = vmatprep.subr.mxu0 0.0
    %241 = vmatpush1.msra.mxu0 %v222
    %242 = vmatprep.subr.mxu0 0.0
    %243 = vmatpush1.msra.mxu0 %v223
    %244 = vmatprep.subr.mxu0 0.0
    %245 = vmatpush1.msra.mxu0 %v224
    %246 = vmatprep.subr.mxu0 0.0
    %247 = vmatpush1.msra.mxu0 %v225
    %248 = vmatprep.subr.mxu0 0.0
    %249 = vmatpush1.msra.mxu0 %v226
    %250 = vmatprep.subr.mxu0 0.0
    %251 = vmatpush1.msra.mxu0 %v227
    %252 = vmatprep.subr.mxu0 0.0
    %253 = vmatpush1.msra.mxu0 %v228
    %254 = vmatprep.subr.mxu0 0.0
    %255 = vmatpush1.msra.mxu0 %v229
    %256 = vmatprep.subr.mxu0 0.0
    %257 = vmatpush1.msra.mxu0 %v230
    %258 = vmatprep.subr.mxu0 0.0
    %259 = vmatpush1.msra.mxu0 %v231
    %260 = vmatprep.subr.mxu0 0.0
    %261 = vmatpush1.msra.mxu0 %v232
    %262 = vmatprep.subr.mxu0 0.0
    %263 = vmatpush1.msra.mxu0 %v233
    %264 = vmatprep.subr.mxu0 0.0
    %265 = vmatpush1.msra.mxu0 %v234
    %266 = vmatprep.subr.mxu0 0.0
    %267 = vmatpush1.msra.mxu0 %v235
    %268 = vmatprep.subr.mxu0 0.0
    %269 = vmatpush1.msra.mxu0 %v236
    %270 = vmatprep.subr.mxu0 0.0
    %271 = vmatpush1.msra.mxu0 %v237
    %272 = vmatprep.subr.mxu0 0.0
    %273 = vmatpush1.msra.mxu0 0.0
    %274 = vmatprep.subr.mxu0 0.0
    %275 = vmatpush1.msra.mxu0 0.0
    %276 = vmatprep.subr.mxu0 0.0
    %277 = vmatpush1.msra.mxu0 0.0
    %278 = vmatprep.subr.mxu0 0.0
    %279 = vmatpush1.msra.mxu0 0.0
    %280 = vmatprep.subr.mxu0 0.0
    %281 = vmatpush1.msra.mxu0 0.0
    %282 = vmatprep.subr.mxu0 0.0
    %283 = vmatpush1.msra.mxu0 0.0
    %284 = vmatprep.subr.mxu0 0.0
    %285 = vmatpush1.msra.mxu0 0.0
    %286 = vmatprep.subr.mxu0 0.0
    %287 = vmatpush1.msra.mxu0 0.0
    %288 = vmatprep.subr.mxu0 0.0
    %289 = vmatpush1.msra.mxu0 0.0
    %290 = vmatprep.subr.mxu0 0.0
    %291 = vmatpush1.msra.mxu0 0.0
    %292 = vmatprep.subr.mxu0 0.0
    %293 = vmatpush1.msra.mxu0 0.0
    %294 = vmatprep.subr.mxu0 0.0
    %295 = vmatpush1.msra.mxu0 0.0
    %296 = vmatprep.subr.mxu0 0.0
    %297 = vmatpush1.msra.mxu0 0.0
    %298 = vmatprep.subr.mxu0 0.0
    %299 = vmatpush1.msra.mxu0 0.0
    %300 = vmatprep.subr.mxu0 0.0
    %301 = vmatpush1.msra.mxu0 0.0
    %302 = vmatprep.subr.mxu0 0.0
    %303 = vmatpush1.msra.mxu0 0.0
    %304 = vmatprep.mubr.f32.mxu0 0.0
    %305 = vmatmul.mubr.f32.gmra.mrb[0].mxu0 %v239
    %v306 = vpop.f32.mrb[0].mxu0
    %v307 = vadd.f32 0.0, %v306
    %v308 = vpop.f32.mrb[0].mxu0
    %309 = vdwg.mxu0
    %v310 = vadd.f32 %v238, %v307
    %311 = vst [vmem:[#allocation2] sm:$0xff] %v310
    // Predicated region
    $region38: #{tpu_custom_call.1} parent=1 // pred_check
      %p312 = pneg %p50
    $region39: #{tpu_custom_call.1} parent=1 // pred_check_branch
      %314 = sbr.rel (%p312) target = $region41
    $region40: #{tpu_custom_call.1} parent=1 // pred_region
      %v315 = vld [vmem:[#allocation2] sm:$0xff]
      %v316 = vld [vmem:[%s5] sm:$0x1]
      %v318 = vlaneseq
      %v319 = vshrl.u32 %v318, 7
      %v320 = vsub.s32 0, %v319
      %v321 = vrot.slane %v316, %v320
      %v323 = vadd.f32 %v315, %v321
      %324 = vst [vmem:[#allocation8] sm:$0xff] %v323
    $region41: #{tpu_custom_call.1} parent=1 // pred_fallthru
      _
    // Predicated region
    $region42: #{tpu_custom_call.1} parent=1 // pred_check
      _
    $region43: #{tpu_custom_call.1} parent=1 // pred_check_branch
      %326 = sbr.rel (0) target = $region45
    $region44: #{tpu_custom_call.1} parent=1 // pred_region
      %s328 = ssub.s32 128, 128
      %329 = vsyncadd [#allocation5], %s328
      %s331 = sshll.u32 [#allocation8], 4
      %s332 = int_to_ptr.vmem [resolvable:$true] %s331
      %334 = dma.vmem_to_hbm [thread:$0]  %s332, 128, %s6, [#allocation5]
    $region45: #{tpu_custom_call.1} parent=1 // pred_fallthru
      _
    // Predicated region
    $region46: #{tpu_custom_call.1} parent=1 // pred_check
      _
    $region47: #{tpu_custom_call.1} parent=1 // pred_check_branch
      %336 = sbr.rel (0) target = $region49
    $region48: #{tpu_custom_call.1} parent=1 // pred_region
      %337 = dma.done [#allocation5], 128
    $region49: #{tpu_custom_call.1} parent=1 // pred_fallthru
      _
    %338 = vsyncpa [#allocation4], 1
    %339 = vsyncpa [#allocation7], 1
    %340 = vsyncpa [#allocation5], 1

</llo_original>
